<compile_context>
chip_gen: v7x
topology: tpu7x:2x2x1
jax: 0.10.0
libtpu: 0.0.40
codegen_flags: <defaults>
</compile_context>

<pallas_src>
import jax
import jax.numpy as jnp
from jax.experimental import pallas as pl
from jax.experimental.pallas import tpu as pltpu

GAMMA = 2.0
BLACK = 3.0 / 255.0
A = 0.95 / (1.0 - BLACK)        # folded prefactor:  A * clip(x*s - black, 0, 1)
B = A * BLACK                   # == clip(x*(s*A) - A*black, 0, A)
SUB = 5.0 / 255.0
LANE = 128
SUBLANE = 8
MAX_ROW_TILE = 512              # rows per block (multiple of 8)


def color_correction_kernel(x_ref, scale_ref, o_ref):
    # x_ref:     (tr, tc) lane-dense tile of the flattened image
    # scale_ref: (tr, 1)  per-row folded scale (channel scale * A), broadcast over lanes
    x = jnp.clip(x_ref[...] * scale_ref[...] - B, 0.0, A)
    # 1/gamma == 0.5 -> sqrt; input >= 0 after the clamp above.
    x = jnp.sqrt(x) - SUB
    o_ref[...] = 255.0 * jnp.clip(x, 0.0, 1.0)


def _round_up(x, m):
    return ((x + m - 1) // m) * m


def _target_tile_bytes():
    """Per-generation tile target: ~8 MiB on v6e/v7x, ~4 MiB elsewhere (v5e, unknown)."""
    try:
        kind = jax.devices()[0].device_kind.lower()
    except Exception:
        kind = ""
    if "v6" in kind or "v7" in kind:
        return 8 * 1024 * 1024
    return 4 * 1024 * 1024


def _pick_col_tile(L, max_lanes):
    """Column tile: multiple of 128 (or the full extent), <= max_lanes and <= L,
    preferring a divisor of L so every store is a full-width unmasked vst."""
    if L <= LANE:
        return L
    cap_units = max(1, min(max_lanes // LANE, L // LANE))
    if L % LANE == 0:
        total_units = L // LANE
        for u in range(cap_units, 0, -1):
            if total_units % u == 0:
                return u * LANE
    # L is not a multiple of 128: take the cap and let Pallas mask the last block.
    return cap_units * LANE


def color_correction(image, *, tile_bytes=None):
    """image: NCHW with C == 3 (computed and returned in float32)."""
    N, C, H, W = image.shape
    assert C == 3, "ColorCorrection expects 3 channels"
    x = image.astype(jnp.float32)      # explicit cast: kernel math is f32

    if tile_bytes is None:
        tile_bytes = _target_tile_bytes()

    # register_buffer('scale', [1.6, 1.1, 1.4][None,:,None,None] / 1.1), with the
    # 0.95/(1-black) prefactor folded in, replicated per row of the 2D view.
    base = jnp.array([1.6, 1.1, 1.4], dtype=jnp.float32) / jnp.float32(1.1)
    folded = base * jnp.float32(A)

    NC, HW = N * C, H * W
    # Lane-dense 2D view (free reshape).  Prefer (N*C*H, W) when it improves
    # sublane (8-row) utilisation and W is already lane-aligned.
    if NC % SUBLANE != 0 and W % LANE == 0:
        R, L = NC * H, W
        scale_col = jnp.tile(jnp.repeat(folded, H), N).reshape(R, 1)
    else:
        R, L = NC, HW
        scale_col = jnp.tile(folded, N).reshape(R, 1)
    x2d = x.reshape(R, L)

    # Row tile: full extent or a multiple of 8, capped so big batches still get
    # wide lane blocks.
    tr = R if R <= MAX_ROW_TILE else MAX_ROW_TILE
    # Column tile: multiple of 128 lanes, sized against the *padded* row count
    # so one (tr, tc) f32 tile is <= tile_bytes.
    max_lanes = max(LANE, (tile_bytes // (_round_up(tr, SUBLANE) * 4)) // LANE * LANE)
    tc = _pick_col_tile(L, max_lanes)

    # Guarantee >= 2 grid steps when the array allows it (v7x has 2 TensorCores;
    # a 1-step grid would leave one idle).
    if pl.cdiv(R, tr) * pl.cdiv(L, tc) == 1:
        if R >= 2 * SUBLANE:
            tr = _round_up(pl.cdiv(R, 2), SUBLANE)
        elif L >= 2 * LANE:
            tc = _round_up(pl.cdiv(L, 2), LANE)

    grid = (pl.cdiv(R, tr), pl.cdiv(L, tc))

    # VMEM budget: 2 double-buffered input tiles + 2 double-buffered output
    # tiles (rows padded to a multiple of 8) + the double-buffered scale column
    # + headroom.  Stays well under v7x's 64 MiB physical VMEM.
    tr_pad = _round_up(tr, SUBLANE)
    tile_vmem = tr_pad * tc * 4
    scale_vmem = tr_pad * LANE * 4
    vmem_limit = 4 * tile_vmem + 2 * scale_vmem + (4 << 20)
    vmem_limit = int(min(max(vmem_limit, 24 << 20), 48 << 20))

    out2d = pl.pallas_call(
        color_correction_kernel,
        out_shape=jax.ShapeDtypeStruct((R, L), jnp.float32),
        grid_spec=pltpu.PrefetchScalarGridSpec(
            num_scalar_prefetch=0,
            grid=grid,
            in_specs=[
                pl.BlockSpec((tr, tc), lambda i, j: (i, j)),
                pl.BlockSpec((tr, 1), lambda i, j: (i, 0)),   # col index constant in j
            ],
            out_specs=pl.BlockSpec((tr, tc), lambda i, j: (i, j)),
        ),
        compiler_params=pltpu.CompilerParams(
            dimension_semantics=("parallel", "parallel"),
            vmem_limit_bytes=vmem_limit,
        ),
    )(x2d, scale_col)

    return out2d.reshape(N, C, H, W)


def color_correction_ref(image):
    """Pure-JAX reference mirroring the PyTorch forward exactly."""
    scale = (jnp.array([1.6, 1.1, 1.4], dtype=jnp.float32) / 1.1).reshape(1, 3, 1, 1)
    x = image.astype(jnp.float32) * scale
    x = 0.95 * (1.0 / (1.0 - BLACK)) * jnp.clip(x - BLACK, 0.0, 1.0)
    x = x ** (1.0 / GAMMA) - SUB
    return 255.0 * jnp.clip(x, 0.0, 1.0)


if __name__ == "__main__":
    key = jax.random.PRNGKey(0)
    shapes = [
        (2, 3, 16, 16),   # (6, 256) view; column-split to get >= 2 grid steps
        (2, 3, 20, 20),   # (6, 400) view; masked trailing column block (HW % 128 != 0)
        (1, 3, 8, 128),   # (24, 128) lane-aligned view; row-split grid
    ]
    for i, shp in enumerate(shapes):
        x = jax.random.uniform(jax.random.fold_in(key, i), shp, dtype=jnp.float32)
        out = jax.block_until_ready(color_correction(x))
        ref = color_correction_ref(x)
        assert out.shape == ref.shape and out.dtype == ref.dtype
        assert jnp.allclose(out, ref, atol=1e-3, rtol=1e-4), f"mismatch vs reference for {shp}"
    print("KERNEL_OK")
</pallas_src>

<mosaic_0001>
module attributes {stable_mosaic.version = 11 : i64} {
  func.func @color_correction_kernel(%arg0: i32, %arg1: i32, %arg2: memref<6x128xf32, #tpu.memory_space<vmem>>, %arg3: memref<6x1xf32, #tpu.memory_space<vmem>>, %arg4: memref<6x128xf32, #tpu.memory_space<vmem>>) attributes {dimension_semantics = [#tpu.dimension_semantics<parallel>, #tpu.dimension_semantics<parallel>], iteration_bounds = array<i64: 1, 2>, scalar_prefetch = 0 : i64, scratch_operands = 0 : i64, tpu.core_type = #tpu.core_type<tc>, window_params = [{transform_indices = @transform_0, window_bounds = array<i64: 6, 128>}, {transform_indices = @transform_1, window_bounds = array<i64: 6, 1>}, {transform_indices = @transform_2, window_bounds = array<i64: 6, 128>}]} {
    %c0 = arith.constant 0 : index
    %c0_0 = arith.constant 0 : index
    %0 = vector.load %arg2[%c0, %c0_0] : memref<6x128xf32, #tpu.memory_space<vmem>>, vector<6x128xf32>
    %c0_1 = arith.constant 0 : index
    %c0_2 = arith.constant 0 : index
    %1 = vector.load %arg3[%c0_1, %c0_2] : memref<6x1xf32, #tpu.memory_space<vmem>>, vector<6x1xf32>
    %2 = vector.broadcast %1 : vector<6x1xf32> to vector<6x128xf32>
    %3 = arith.mulf %0, %2 : vector<6x128xf32>
    %cst = arith.constant 0.0113095241 : f32
    %4 = vector.broadcast %cst : f32 to vector<6x128xf32>
    %5 = arith.subf %3, %4 : vector<6x128xf32>
    %cst_3 = arith.constant 0.000000e+00 : f32
    %cst_4 = arith.constant 0.961309552 : f32
    %6 = vector.broadcast %cst_3 : f32 to vector<6x128xf32>
    %7 = arith.maximumf %6, %5 : vector<6x128xf32>
    %8 = vector.broadcast %cst_4 : f32 to vector<6x128xf32>
    %9 = arith.minimumf %8, %7 : vector<6x128xf32>
    %10 = math.sqrt %9 : vector<6x128xf32>
    %cst_5 = arith.constant 0.0196078438 : f32
    %11 = vector.broadcast %cst_5 : f32 to vector<6x128xf32>
    %12 = arith.subf %10, %11 : vector<6x128xf32>
    %cst_6 = arith.constant 0.000000e+00 : f32
    %cst_7 = arith.constant 1.000000e+00 : f32
    %13 = vector.broadcast %cst_6 : f32 to vector<6x128xf32>
    %14 = arith.maximumf %13, %12 : vector<6x128xf32>
    %15 = vector.broadcast %cst_7 : f32 to vector<6x128xf32>
    %16 = arith.minimumf %15, %14 : vector<6x128xf32>
    %cst_8 = arith.constant 2.550000e+02 : f32
    %17 = vector.broadcast %cst_8 : f32 to vector<6x128xf32>
    %18 = arith.mulf %17, %16 : vector<6x128xf32>
    %c0_9 = arith.constant 0 : index
    %c0_10 = arith.constant 0 : index
    %19 = vector.load %arg4[%c0_9, %c0_10] : memref<6x128xf32, #tpu.memory_space<vmem>>, vector<6x128xf32>
    tpu.vector_store %arg4[%c0_9, %c0_10], %18 {strides = array<i32>} : memref<6x128xf32, #tpu.memory_space<vmem>>, vector<6x128xf32>,
    return
  }
  func.func @transform_0(%arg0: i32, %arg1: i32) -> (i32, i32) {
    %c0_i32 = arith.constant 0 : i32
    return %arg0, %arg1 : i32, i32
  }
  func.func @transform_1(%arg0: i32, %arg1: i32) -> (i32, i32) {
    %c0_i32 = arith.constant 0 : i32
    %c0_i32_0 = arith.constant 0 : i32
    return %arg0, %c0_i32 : i32, i32
  }
  func.func @transform_2(%arg0: i32, %arg1: i32) -> (i32, i32) {
    %c0_i32 = arith.constant 0 : i32
    return %arg0, %arg1 : i32, i32
  }
}

</mosaic_0001>

<llo_original>
// kernel: tpu_custom_call.1
$region0: #{tpu_custom_call.1}
  #allocation0 [shape = 'u32[]', space=smem, size = 0x4, offset = 0x4, fixed_abs, tag = 'smem constant byte address 0x4 - core index']
  #allocation1 [shape = 'u32[144,128]{1,0:T(1,128)}', space=vmem, size = 0x12000, scoped, tag = 'internal scratch']
  %s0 = inlined_call_operand.hbm [shape: f32[6,256], index: 0, kind: input, shape index: {}]
  %s1 = inlined_call_operand.vmem [shape: f32[6,1], index: 1, kind: input, shape index: {}]
  %s2 = inlined_call_operand.hbm [shape: f32[6,256], index: 2, kind: output, shape index: {}]
  %s3 = sld [smem:[#allocation0]]
  $region45: #{tpu_custom_call.1} parent=0
    _
  %s5 = ssub.s32 1, %s3
  %s6 = scalar_select 0, %s5, %s3
  $region1: #{tpu_custom_call.1} parent=0
    #allocation2 [shape = 'u8[8192]{0}', space=vmem, size = 0x2000, scoped, tag = 'input window, operand 0']
    #allocation3 [shape = 's32[2]{0}', space=sflag, size = 0x8, scoped, tag = 'scoped memory for tpu_custom_call.1']
    #allocation4 [shape = 's32[2]{0}', space=sflag, size = 0x8, scoped, tag = 'scoped memory for tpu_custom_call.1']
    #allocation5 [shape = 'u8[8192]{0}', space=vmem, size = 0x2000, scoped, tag = 'output window, operand 0']
    %7 = vsyncpa [#allocation3], 0
    %s8 = scalar_lea.sflag [#allocation3], 1
    %9 = vsyncpa %s8, 0
    %10 = vsyncpa [#allocation4], 0
    %s11 = scalar_lea.sflag [#allocation4], 1
    %12 = vsyncpa %s11, 0
    loop: start=0, step=1, limit=4
    $region2: #{tpu_custom_call.1} parent=1 // loop_pre_header
      _
    $region3: #{tpu_custom_call.1} parent=1 // loop_header
      %s14 = sphi 0, %s18
      %p15 = scmp.ge.s32.totalorder %s14, 4
      %s21 = sphi 0, %s33
      %s22 = sphi 0, %s29
      %s23 = sphi 0, %s21
      %s24 = sphi 0, %s22
      %s25 = sphi 0, %s23
      %s26 = sphi 0, %s24
      %s38 = sphi 0, %s40
      %s41 = sphi 0, %s38
      %s42 = sphi 0, %s41
      %s58 = sphi 0, %s42
      %s64 = sphi 0, %s66
      %s67 = sphi 0, %s64
      %s68 = sphi 0, %s67
      %s84 = sphi 0, %s68
      %s92 = sphi 0, %s94
      %s95 = sphi 0, %s92
      %s96 = sphi 0, %s95
      %s112 = sphi 0, %s96
    $region4: #{tpu_custom_call.1} parent=1 // loop_header_branch
      %17 = sbr.rel (%p15) target = $region8
    $region5: #{tpu_custom_call.1} parent=1 // loop_body
      %s19 = ssub.s32 %s14, 1
      %s20 = ssub.s32 %s14, 2
      %s27 = sadd.s32 1, %s22
      %p28 = scmp.ge.s32.totalorder %s27, 2
      %s29 = scalar_select %p28, 0, %s27
      %s30 = sadd.s32 1, %s21
      %s31 = scalar_select %p28, %s30, %s21
      %p32 = scmp.ge.s32.totalorder %s31, 1
      %s33 = scalar_select %p32, 0, %s31
      %s34 = ssub.s32 %s21, %s33
      %s35 = ssub.s32 %s22, %s29
      %s36 = sor.u32 %s34, %s35
      %p37 = scmp.eq.s32.totalorder %s36, 0
      %s39 = sadd.s32 %s38, 1
      %s40 = scalar_select %p37, %s38, %s39
      %p43 = pneg %p37
      %p44 = scmp.eq.s32.totalorder %s14, 1
      %p45 = por %p43, %p44
      %p46 = scmp.ne.s32.totalorder %s38, %s41
      %p47 = scmp.eq.s32.totalorder %s14, 0
      %p48 = por %p46, %p47
      %p49 = scmp.ne.s32.totalorder %s38, %s41
      %p50 = scmp.eq.s32.totalorder %s19, 1
      %p51 = por %p49, %p50
      %p52 = scmp.ne.s32.totalorder %s41, %s42
      %p53 = scmp.eq.s32.totalorder %s19, 0
      %p54 = por %p52, %p53
      %p55 = scmp.ne.s32.totalorder %s41, %s42
      %p56 = scmp.eq.s32.totalorder %s20, 1
      %p57 = por %p55, %p56
      %p59 = scmp.ne.s32.totalorder %s42, %s58
      %p60 = scmp.eq.s32.totalorder %s20, 0
      %p61 = por %p59, %p60
      %s62 = ssub.s32 %s21, %s33
      %p63 = scmp.eq.s32.totalorder %s62, 0
      %s65 = sadd.s32 %s64, 1
      %s66 = scalar_select %p63, %s64, %s65
      %p69 = pneg %p63
      %p70 = scmp.eq.s32.totalorder %s14, 1
      %p71 = por %p69, %p70
      %p72 = scmp.ne.s32.totalorder %s64, %s67
      %p73 = scmp.eq.s32.totalorder %s14, 0
      %p74 = por %p72, %p73
      %p75 = scmp.ne.s32.totalorder %s64, %s67
      %p76 = scmp.eq.s32.totalorder %s19, 1
      %p77 = por %p75, %p76
      %p78 = scmp.ne.s32.totalorder %s67, %s68
      %p79 = scmp.eq.s32.totalorder %s19, 0
      %p80 = por %p78, %p79
      %p81 = scmp.ne.s32.totalorder %s67, %s68
      %p82 = scmp.eq.s32.totalorder %s20, 1
      %p83 = por %p81, %p82
      %p85 = scmp.ne.s32.totalorder %s68, %s84
      %p86 = scmp.eq.s32.totalorder %s20, 0
      %p87 = por %p85, %p86
      %s88 = ssub.s32 %s21, %s33
      %s89 = ssub.s32 %s22, %s29
      %s90 = sor.u32 %s88, %s89
      %p91 = scmp.eq.s32.totalorder %s90, 0
      %s93 = sadd.s32 %s92, 1
      %s94 = scalar_select %p91, %s92, %s93
      %p97 = pneg %p91
      %p98 = scmp.eq.s32.totalorder %s14, 1
      %p99 = por %p97, %p98
      %p100 = scmp.ne.s32.totalorder %s92, %s95
      %p101 = scmp.eq.s32.totalorder %s14, 0
      %p102 = por %p100, %p101
      %p103 = scmp.ne.s32.totalorder %s92, %s95
      %p104 = scmp.eq.s32.totalorder %s19, 1
      %p105 = por %p103, %p104
      %p106 = scmp.ne.s32.totalorder %s95, %s96
      %p107 = scmp.eq.s32.totalorder %s19, 0
      %p108 = por %p106, %p107
      %p109 = scmp.ne.s32.totalorder %s95, %s96
      %p110 = scmp.eq.s32.totalorder %s20, 1
      %p111 = por %p109, %p110
      %p113 = scmp.ne.s32.totalorder %s96, %s112
      %p114 = scmp.eq.s32.totalorder %s20, 0
      %p115 = por %p113, %p114
      %p116 = scmp.le.s32.totalorder 1, %s14
      %p117 = scmp.lt.s32.totalorder %s14, 3
      %p118 = pnand %p116, %p117
      %p119 = pneg %p118
      // Predicated region
      $region9: #{tpu_custom_call.1} parent=5 // pred_check
        _
      $region10: #{tpu_custom_call.1} parent=5 // pred_check_branch
        %121 = sbr.rel (%p118) target = $region12
      $region11: #{tpu_custom_call.1} parent=5 // pred_region
        %s122 = ssub.s32 %s14, 1
        // Predicated region
        $region13: #{tpu_custom_call.1} parent=11 // pred_check
          %p123 = pneg %p80
        $region14: #{tpu_custom_call.1} parent=11 // pred_check_branch
          %125 = sbr.rel (%p123) target = $region16
        $region15: #{tpu_custom_call.1} parent=11 // pred_region
          %p126 = scmp.lt.s32.totalorder %s23, 0
          %s127 = scalar_select %p126, %s23, 0
          %s128 = smul.addr %s127, 8
          %s129 = scalar_lea.vmem %s1, %s128
        $region16: #{tpu_custom_call.1} parent=11 // pred_fallthru
          _
      $region12: #{tpu_custom_call.1} parent=5 // pred_fallthru
        _
      %p130 = scmp.lt.s32.totalorder %s14, 2
      // Predicated region
      $region17: #{tpu_custom_call.1} parent=5 // pred_check
        %p131 = pneg %p130
      $region18: #{tpu_custom_call.1} parent=5 // pred_check_branch
        %133 = sbr.rel (%p131) target = $region20
      $region19: #{tpu_custom_call.1} parent=5 // pred_region
        // Predicated region
        $region21: #{tpu_custom_call.1} parent=19 // pred_check
          %p134 = pneg %p48
        $region22: #{tpu_custom_call.1} parent=19 // pred_check_branch
          %136 = sbr.rel (%p134) target = $region24
        $region23: #{tpu_custom_call.1} parent=19 // pred_region
          %s137 = sand.u32 %s38, 1
          %s138 = scalar_lea.sflag [#allocation3], %s137
          %s139 = sand.u32 %s38, 1
          %s140 = smul.addr %s139, 8
          %s141 = scalar_lea.vmem [#allocation2], %s140
          %s143 = ssub.s32 128, 128
          %144 = vsyncadd %s138, %s143
          %s145 = smul.addr %s21, 2
          %s146 = sadd.s32 %s22, %s145
          %s147 = smul.addr %s146, 128
          %s148 = scalar_lea.hbm %s0, %s147
          %s150 = sshll.u32 %s141, 4
          %s151 = int_to_ptr.vmem [resolvable:$true] %s150
          %153 = dma.hbm_to_vmem [thread:$0]  %s148, 128, %s151, %s138
        $region24: #{tpu_custom_call.1} parent=19 // pred_fallthru
          _
      $region20: #{tpu_custom_call.1} parent=5 // pred_fallthru
        _
      %p154 = scmp.le.s32.totalorder 1, %s14
      %p155 = scmp.lt.s32.totalorder %s14, 3
      %p156 = pnand %p154, %p155
      %p157 = pneg %p156
      // Predicated region
      $region25: #{tpu_custom_call.1} parent=5 // pred_check
        _
      $region26: #{tpu_custom_call.1} parent=5 // pred_check_branch
        %159 = sbr.rel (%p156) target = $region28
      $region27: #{tpu_custom_call.1} parent=5 // pred_region
        %s160 = ssub.s32 %s14, 1
        %s161 = sand.u32 %s41, 1
        %s162 = scalar_lea.sflag [#allocation3], %s161
        %s163 = sand.u32 %s41, 1
        %s164 = smul.addr %s163, 8
        %s165 = scalar_lea.vmem [#allocation2], %s164
        // Predicated region
        $region29: #{tpu_custom_call.1} parent=27 // pred_check
          %p166 = pneg %p54
        $region30: #{tpu_custom_call.1} parent=27 // pred_check_branch
          %168 = sbr.rel (%p166) target = $region32
        $region31: #{tpu_custom_call.1} parent=27 // pred_region
          %169 = dma.done %s162, 128
        $region32: #{tpu_custom_call.1} parent=27 // pred_fallthru
          _
        %s170 = sand.u32 %s41, 1
        %s171 = scalar_lea.sflag [#allocation3], %s170
        %s172 = sand.u32 %s41, 1
        %s173 = smul.addr %s172, 8
        %s174 = scalar_lea.vmem [#allocation2], %s173
        %p175 = pneg %p54
        %p176 = pneg %p51
        %p177 = scmp.lt.s32.totalorder %s23, 0
        %s178 = scalar_select %p177, %s23, 0
        %s179 = smul.addr %s178, 8
        %s180 = scalar_lea.vmem %s1, %s179
        %p181 = pneg %p80
        %p182 = pneg %p77
        %p183 = pneg %p108
        %p184 = pneg %p105
        %s185 = sand.u32 %s95, 1
        %s186 = scalar_lea.sflag [#allocation4], %s185
        %s187 = sand.u32 %s95, 1
        %s188 = smul.addr %s187, 8
        %s189 = scalar_lea.vmem [#allocation5], %s188
        %p190 = scmp.lt.s32.totalorder %s23, 0
        %s191 = scalar_select %p190, %s23, 0
        %s192 = smul.addr %s191, 8
        %s193 = scalar_lea.vmem %s1, %s192
        %v194 = vld [vmem:[%s165] sm:$0x3f]
        %v195 = vld [vmem:[%s193] sm:$0x3f]
        %197 = vset.pattern.permute.xlu0 0
        %198 = vperm.xlu0 %197, %v195
        %v199 = vpop.permute.xlu0 %198
        %v201 = vmul.f32 %v194, %v199
        %v202 = vsub.f32 %v201, 0.011309524
        %v203 = vmax.f32 %v202, 0.0
        %v204 = vmin.f32 %v203, 0.96130955
        %v205 = vrsqrt.pop %v204
        %v206 = vmul.f32 %v204, %v205
        %vm207 = vcmp.eq.f32.partialorder %v204, inf
        %v208 = vsel %vm207, %v204, %v206
        %vm209 = vcmp.eq.f32.partialorder %v204, 0.0
        %v210 = vand.u32 %v204, 2147483648
        %v211 = vsel %vm209, %v210, %v208
        %v212 = vsub.f32 %v211, 0.019607844
        %v213 = vmax.f32 %v212, 0.0
        %v214 = vmin.f32 %v213, 1.0
        %v215 = vmul.f32 %v214, 255.0
        %216 = vst [vmem:[%s189] sm:$0x3f] %v215
        %s217 = sand.u32 %s95, 1
        %s218 = scalar_lea.sflag [#allocation4], %s217
        %s219 = sand.u32 %s95, 1
        %s220 = smul.addr %s219, 8
        %s221 = scalar_lea.vmem [#allocation5], %s220
        // Predicated region
        $region33: #{tpu_custom_call.1} parent=27 // pred_check
          %p222 = pneg %p105
        $region34: #{tpu_custom_call.1} parent=27 // pred_check_branch
          %224 = sbr.rel (%p222) target = $region36
        $region35: #{tpu_custom_call.1} parent=27 // pred_region
          %s226 = ssub.s32 128, 128
          %227 = vsyncadd %s218, %s226
          %s228 = smul.addr %s23, 2
          %s229 = sadd.s32 %s24, %s228
          %s230 = smul.addr %s229, 128
          %s231 = scalar_lea.hbm %s2, %s230
          %s233 = sshll.u32 %s221, 4
          %s234 = int_to_ptr.vmem [resolvable:$true] %s233
          %236 = dma.vmem_to_hbm [thread:$0]  %s234, 128, %s231, %s218
        $region36: #{tpu_custom_call.1} parent=27 // pred_fallthru
          _
      $region28: #{tpu_custom_call.1} parent=5 // pred_fallthru
        _
      %p237 = scmp.le.s32.totalorder 2, %s14
      // Predicated region
      $region37: #{tpu_custom_call.1} parent=5 // pred_check
        %p238 = pneg %p237
      $region38: #{tpu_custom_call.1} parent=5 // pred_check_branch
        %240 = sbr.rel (%p238) target = $region40
      $region39: #{tpu_custom_call.1} parent=5 // pred_region
        %s241 = ssub.s32 %s14, 2
        // Predicated region
        $region41: #{tpu_custom_call.1} parent=39 // pred_check
          %p242 = pneg %p111
        $region42: #{tpu_custom_call.1} parent=39 // pred_check_branch
          %244 = sbr.rel (%p242) target = $region44
        $region43: #{tpu_custom_call.1} parent=39 // pred_region
          %s245 = sand.u32 %s96, 1
          %s246 = scalar_lea.sflag [#allocation4], %s245
          %s247 = sand.u32 %s96, 1
          %s248 = smul.addr %s247, 8
          %s249 = scalar_lea.vmem [#allocation5], %s248
          %250 = dma.done %s246, 128
        $region44: #{tpu_custom_call.1} parent=39 // pred_fallthru
          _
      $region40: #{tpu_custom_call.1} parent=5 // pred_fallthru
        _
    $region6: #{tpu_custom_call.1} parent=1 // loop_footer
      %s18 = sadd.s32 1, %s14
    $region7: #{tpu_custom_call.1} parent=1 // loop_footer_branch
      %13 = sbr.rel target = $region3
    $region8: #{tpu_custom_call.1} parent=1 // loop_exit
      _
    %251 = vsyncpa [#allocation3], 1
    %s252 = scalar_lea.sflag [#allocation3], 1
    %253 = vsyncpa %s252, 1
    %254 = vsyncpa [#allocation4], 1
    %s255 = scalar_lea.sflag [#allocation4], 1
    %256 = vsyncpa %s255, 1

</llo_original>
